<compile_context>
chip_gen: v7x
topology: tpu7x:2x2x1
jax: 0.10.0
libtpu: 0.0.40
codegen_flags: <defaults>
</compile_context>

<pallas_src>
import functools

import jax
import jax.numpy as jnp
from jax import lax
from jax.experimental import pallas as pl
from jax.experimental.pallas import tpu as pltpu


def _mfb_fusion_kernel(text_ref, image_ref, w_txt_ref, b_txt_ref,
                       w_img_ref, b_img_ref, out_ref, acc_ref,
                       *, fact_dim, chunk_facts, output_dim):
    c = pl.program_id(1)

    @pl.when(c == 0)
    def _():
        acc_ref[...] = jnp.zeros_like(acc_ref)

    # Projections for this column chunk on the MXU (bf16/f32 operands, f32 acc),
    # bias add in f32.  Shapes: (bt, chunk_facts * output_dim).
    image_proj = jnp.dot(image_ref[...], w_img_ref[...],
                         preferred_element_type=jnp.float32) + b_img_ref[...]
    text_proj = jnp.dot(text_ref[...], w_txt_ref[...],
                        preferred_element_type=jnp.float32) + b_txt_ref[...]
    prod = image_proj * text_proj

    # Sum the chunk_facts fact slices of this chunk (each output_dim wide,
    # 128-lane aligned) with a pairwise tree to avoid a serial add chain.
    slices = [prod[:, f * output_dim:(f + 1) * output_dim]
              for f in range(chunk_facts)]
    while len(slices) > 1:
        nxt = [a + b for a, b in zip(slices[0::2], slices[1::2])]
        if len(slices) % 2:
            nxt.append(slices[-1])
        slices = nxt
    acc_ref[...] += slices[0]

    @pl.when(c == pl.num_programs(1) - 1)
    def _():
        mean = acc_ref[...] * (1.0 / float(fact_dim))
        # F.normalize(p=2, dim=1, eps=1e-12):
        #   x / max(||x||, 1e-12) == x * rsqrt(max(||x||^2, 1e-24))   (EUP rsqrt, f32)
        sq_norm = jnp.sum(mean * mean, axis=-1, keepdims=True)
        inv_norm = lax.rsqrt(jnp.maximum(sq_norm, 1e-24))
        out_ref[...] = (mean * inv_norm).astype(out_ref.dtype)


def _pick_chunk_facts(fact_dim, output_dim, in_dims_sum, bt, itemsize,
                      budget_bytes, max_chunk_facts=None):
    """Largest divisor of fact_dim whose per-chunk working set fits the budget."""
    cap = fact_dim if max_chunk_facts is None else max(1, min(max_chunk_facts, fact_dim))
    best = 1
    for cf in range(1, cap + 1):
        if fact_dim % cf:
            continue
        chunk_cols = cf * output_dim
        need = (2 * in_dims_sum * chunk_cols * itemsize   # double-buffered W blocks
                + 4 * bt * chunk_cols * 4)                # live f32 intermediates
        if need <= budget_bytes:
            best = cf
    return best


def mfb_fusion(text_embeddings, image_embeddings,
               w_txt, b_txt, w_img, b_img, *,
               fact_dim, output_dim,
               compute_dtype=jnp.bfloat16, batch_tile=512,
               max_chunk_facts=None, out_dtype=jnp.float32):
    B, text_dim = text_embeddings.shape
    _, image_dim = image_embeddings.shape
    n_cols = fact_dim * output_dim
    assert w_txt.shape == (text_dim, n_cols)
    assert w_img.shape == (image_dim, n_cols)
    # Lane-dense fact slices and unmasked output stores rely on 128-lane alignment.
    # TODO(synk): pad output_dim to a multiple of 128 instead of asserting.
    assert output_dim % 128 == 0, "output_dim must be a multiple of 128"

    # MXU operands in compute_dtype; biases / accumulators stay f32.
    text_c = text_embeddings.astype(compute_dtype)
    image_c = image_embeddings.astype(compute_dtype)
    w_txt_c = w_txt.astype(compute_dtype)
    w_img_c = w_img.astype(compute_dtype)
    b_txt_c = b_txt.reshape(1, n_cols).astype(jnp.float32)
    b_img_c = b_img.reshape(1, n_cols).astype(jnp.float32)

    # Batch tiling: round small batches up to a sublane multiple; larger batches are
    # tiled (large tiles amortize the ~0.35us per-grid-step overhead; activations are
    # tiny so VMEM is not the limiter).
    if B > batch_tile:
        bt = batch_tile
    else:
        bt = ((B + 7) // 8) * 8
    pad = (-B) % bt
    if pad:
        # Zero rows -> mean 0 -> normalized output 0 (no NaN); sliced off below.
        text_c = jnp.pad(text_c, ((0, pad), (0, 0)))
        image_c = jnp.pad(image_c, ((0, pad), (0, 0)))
    b_padded = B + pad
    num_batch_tiles = b_padded // bt

    itm = jnp.dtype(compute_dtype).itemsize
    in_dims_sum = text_dim + image_dim

    # Column (fact) chunking so weight blocks stream instead of needing to be
    # fully VMEM-resident.
    chunk_facts = _pick_chunk_facts(fact_dim, output_dim, in_dims_sum, bt, itm,
                                    budget_bytes=20 << 20,
                                    max_chunk_facts=max_chunk_facts)
    chunk_cols = chunk_facts * output_dim
    num_col_chunks = fact_dim // chunk_facts

    # VMEM budget from actual per-step shapes, clamped generation-aware.
    vmem_needed = (
        2 * in_dims_sum * chunk_cols * itm      # double-buffered weight column blocks
        + 2 * 2 * chunk_cols * 4                # double-buffered bias column blocks
        + 2 * bt * in_dims_sum * itm            # double-buffered activation tiles
        + 2 * bt * output_dim * 4               # double-buffered output tiles
        + bt * output_dim * 4                   # accumulator scratch
        + 4 * bt * chunk_cols * 4               # live f32 intermediates headroom
        + (4 << 20)                             # compiler scratch slack
    )
    try:
        phys_vmem = int(pltpu.get_tpu_info().vmem_capacity_bytes)
    except Exception:
        phys_vmem = 64 << 20                    # conservative (v7x per-core VMEM)
    vmem_limit = int(min(max(vmem_needed, 32 << 20), phys_vmem - (8 << 20)))
    vmem_limit = max(vmem_limit, 16 << 20)

    # Advisory cost estimate (this kernel is DMA-shaped, not FLOP-shaped).
    cost = pl.CostEstimate(
        flops=int(2 * B * in_dims_sum * n_cols + 4 * B * n_cols),
        transcendentals=int(B),
        bytes_accessed=int(
            b_padded * in_dims_sum * itm
            + num_batch_tiles * in_dims_sum * n_cols * itm
            + num_batch_tiles * 2 * n_cols * 4
            + b_padded * output_dim * jnp.dtype(out_dtype).itemsize),
    )

    kernel = functools.partial(_mfb_fusion_kernel, fact_dim=fact_dim,
                               chunk_facts=chunk_facts, output_dim=output_dim)

    # TODO(synk): when B <= batch_tile the grid has a single parallel tile, so one of
    # v7x's two TensorCores idles; splitting output_dim would need a 2nd normalize pass.
    out = pl.pallas_call(
        kernel,
        out_shape=jax.ShapeDtypeStruct((b_padded, output_dim), out_dtype),
        grid=(num_batch_tiles, num_col_chunks),
        in_specs=[
            pl.BlockSpec((bt, text_dim), lambda i, c: (i, 0)),         # text tile
            pl.BlockSpec((bt, image_dim), lambda i, c: (i, 0)),        # image tile
            pl.BlockSpec((text_dim, chunk_cols), lambda i, c: (0, c)),  # W_txt chunk
            pl.BlockSpec((1, chunk_cols), lambda i, c: (0, c)),         # b_txt chunk
            pl.BlockSpec((image_dim, chunk_cols), lambda i, c: (0, c)),  # W_img chunk
            pl.BlockSpec((1, chunk_cols), lambda i, c: (0, c)),         # b_img chunk
        ],
        out_specs=pl.BlockSpec((bt, output_dim), lambda i, c: (i, 0)),
        scratch_shapes=[pltpu.VMEM((bt, output_dim), jnp.float32)],
        compiler_params=pltpu.CompilerParams(
            dimension_semantics=("parallel", "arbitrary"),
            vmem_limit_bytes=vmem_limit,
        ),
        cost_estimate=cost,
    )(text_c, image_c, w_txt_c, b_txt_c, w_img_c, b_img_c)

    return out[:B] if pad else out


def mfb_fusion_ref(text_embeddings, image_embeddings,
                   w_txt, b_txt, w_img, b_img, *, fact_dim, output_dim):
    image_proj = image_embeddings @ w_img + b_img
    text_proj = text_embeddings @ w_txt + b_txt
    mfb = (image_proj * text_proj).reshape(-1, fact_dim, output_dim).mean(axis=1)
    norm = jnp.sqrt(jnp.sum(mfb * mfb, axis=1, keepdims=True))
    return mfb / jnp.maximum(norm, 1e-12)


if __name__ == "__main__":
    # Small shapes consistent with the module.
    batch = 8
    image_embed_dim = 32
    text_embed_dim = 24
    fact_dim = 4
    output_dim = 128

    key = jax.random.PRNGKey(0)
    k_txt, k_img, k_wt, k_bt, k_wi, k_bi = jax.random.split(key, 6)

    text_embeddings = jax.random.normal(k_txt, (batch, text_embed_dim), jnp.float32)
    image_embeddings = jax.random.normal(k_img, (batch, image_embed_dim), jnp.float32)

    # Linear params stored pre-transposed: weight.T as (in_dim, fact*out).
    w_txt = jax.random.normal(k_wt, (text_embed_dim, fact_dim * output_dim), jnp.float32) * 0.05
    b_txt = jax.random.normal(k_bt, (1, fact_dim * output_dim), jnp.float32) * 0.05
    w_img = jax.random.normal(k_wi, (image_embed_dim, fact_dim * output_dim), jnp.float32) * 0.05
    b_img = jax.random.normal(k_bi, (1, fact_dim * output_dim), jnp.float32) * 0.05

    ref = mfb_fusion_ref(text_embeddings, image_embeddings,
                         w_txt, b_txt, w_img, b_img,
                         fact_dim=fact_dim, output_dim=output_dim)

    # 1) f32 compute path, single column chunk: must match the reference tightly.
    out_f32 = mfb_fusion(text_embeddings, image_embeddings,
                         w_txt, b_txt, w_img, b_img,
                         fact_dim=fact_dim, output_dim=output_dim,
                         compute_dtype=jnp.float32)
    out_f32 = jax.block_until_ready(out_f32)
    assert out_f32.shape == (batch, output_dim)
    assert jnp.allclose(out_f32, ref, atol=1e-5, rtol=1e-5)

    # 2) bf16 MXU path (default / performance path): looser tolerance
    #    (~1e-2 relative error vs the f32 reference is expected from bf16 operands).
    out_bf16 = mfb_fusion(text_embeddings, image_embeddings,
                          w_txt, b_txt, w_img, b_img,
                          fact_dim=fact_dim, output_dim=output_dim)
    out_bf16 = jax.block_until_ready(out_bf16)
    assert out_bf16.shape == (batch, output_dim)
    assert jnp.allclose(out_bf16, ref, atol=3e-2, rtol=3e-2)

    # 3) Forced column-chunk streaming: 4 fact chunks, accumulate-then-finalize path.
    out_chunked = mfb_fusion(text_embeddings, image_embeddings,
                             w_txt, b_txt, w_img, b_img,
                             fact_dim=fact_dim, output_dim=output_dim,
                             compute_dtype=jnp.float32, max_chunk_facts=1)
    out_chunked = jax.block_until_ready(out_chunked)
    assert jnp.allclose(out_chunked, ref, atol=1e-5, rtol=1e-5)

    # 4) Batch-tiled / padded path (padded rows stay 0, no NaN leaks) + 2 fact chunks.
    big_b = 260
    kt2, ki2 = jax.random.split(jax.random.PRNGKey(1), 2)
    text_big = jax.random.normal(kt2, (big_b, text_embed_dim), jnp.float32)
    image_big = jax.random.normal(ki2, (big_b, image_embed_dim), jnp.float32)
    out_big = mfb_fusion(text_big, image_big,
                         w_txt, b_txt, w_img, b_img,
                         fact_dim=fact_dim, output_dim=output_dim,
                         compute_dtype=jnp.float32, batch_tile=128,
                         max_chunk_facts=2)
    out_big = jax.block_until_ready(out_big)
    ref_big = mfb_fusion_ref(text_big, image_big,
                             w_txt, b_txt, w_img, b_img,
                             fact_dim=fact_dim, output_dim=output_dim)
    assert out_big.shape == (big_b, output_dim)
    assert jnp.isfinite(out_big).all()
    assert jnp.allclose(out_big, ref_big, atol=1e-5, rtol=1e-5)

    print("KERNEL_OK")
</pallas_src>

<mosaic_0001>
module attributes {stable_mosaic.version = 11 : i64} {
  func.func @_mfb_fusion_kernel(%arg0: i32, %arg1: i32, %arg2: memref<8x24xf32, #tpu.memory_space<vmem>>, %arg3: memref<8x32xf32, #tpu.memory_space<vmem>>, %arg4: memref<24x512xf32, #tpu.memory_space<vmem>>, %arg5: memref<1x512xf32, #tpu.memory_space<vmem>>, %arg6: memref<32x512xf32, #tpu.memory_space<vmem>>, %arg7: memref<1x512xf32, #tpu.memory_space<vmem>>, %arg8: memref<8x128xf32, #tpu.memory_space<vmem>>, %arg9: memref<8x128xf32, #tpu.memory_space<vmem>>) attributes {dimension_semantics = [#tpu.dimension_semantics<parallel>, #tpu.dimension_semantics<arbitrary>], iteration_bounds = array<i64: 1, 1>, scalar_prefetch = 0 : i64, scratch_operands = 1 : i64, tpu.core_type = #tpu.core_type<tc>, window_params = [{transform_indices = @transform_0, window_bounds = array<i64: 8, 24>}, {transform_indices = @transform_1, window_bounds = array<i64: 8, 32>}, {transform_indices = @transform_2, window_bounds = array<i64: 24, 512>}, {transform_indices = @transform_3, window_bounds = array<i64: 1, 512>}, {transform_indices = @transform_4, window_bounds = array<i64: 32, 512>}, {transform_indices = @transform_5, window_bounds = array<i64: 1, 512>}, {transform_indices = @transform_6, window_bounds = array<i64: 8, 128>}]} {
    %c0_i32 = arith.constant 0 : i32
    %0 = arith.cmpi eq, %arg1, %c0_i32 : i32
    %1 = arith.extui %0 : i1 to i32
    %c0_i32_0 = arith.constant 0 : i32
    %2 = arith.cmpi ne, %1, %c0_i32_0 : i32
    scf.if %2 {
      %cst_19 = arith.constant 0.000000e+00 : f32
      %29 = vector.broadcast %cst_19 : f32 to vector<8x128xf32>
      %c0_20 = arith.constant 0 : index
      %c0_21 = arith.constant 0 : index
      %30 = vector.load %arg9[%c0_20, %c0_21] : memref<8x128xf32, #tpu.memory_space<vmem>>, vector<8x128xf32>
      tpu.vector_store %arg9[%c0_20, %c0_21], %29 {strides = array<i32>} : memref<8x128xf32, #tpu.memory_space<vmem>>, vector<8x128xf32>,
    } else {
    }
    %c0 = arith.constant 0 : index
    %c0_1 = arith.constant 0 : index
    %3 = vector.load %arg3[%c0, %c0_1] : memref<8x32xf32, #tpu.memory_space<vmem>>, vector<8x32xf32>
    %c0_2 = arith.constant 0 : index
    %c0_3 = arith.constant 0 : index
    %4 = vector.load %arg6[%c0_2, %c0_3] : memref<32x512xf32, #tpu.memory_space<vmem>>, vector<32x512xf32>
    %cst = arith.constant dense<0.000000e+00> : vector<8x512xf32>
    %5 = tpu.matmul %3, %4, %cst {dimension_numbers = #tpu.dot_dimension_numbers<[1], [0], [0], [1], [0, 0, 1, 1], [], []>} : vector<8x32xf32>, vector<32x512xf32>, vector<8x512xf32> -> vector<8x512xf32>
    %c0_4 = arith.constant 0 : index
    %c0_5 = arith.constant 0 : index
    %6 = vector.load %arg7[%c0_4, %c0_5] : memref<1x512xf32, #tpu.memory_space<vmem>>, vector<1x512xf32>
    %7 = vector.broadcast %6 : vector<1x512xf32> to vector<8x512xf32>
    %8 = arith.addf %5, %7 : vector<8x512xf32>
    %c0_6 = arith.constant 0 : index
    %c0_7 = arith.constant 0 : index
    %9 = vector.load %arg2[%c0_6, %c0_7] : memref<8x24xf32, #tpu.memory_space<vmem>>, vector<8x24xf32>
    %c0_8 = arith.constant 0 : index
    %c0_9 = arith.constant 0 : index
    %10 = vector.load %arg4[%c0_8, %c0_9] : memref<24x512xf32, #tpu.memory_space<vmem>>, vector<24x512xf32>
    %cst_10 = arith.constant dense<0.000000e+00> : vector<8x512xf32>
    %11 = tpu.matmul %9, %10, %cst_10 {dimension_numbers = #tpu.dot_dimension_numbers<[1], [0], [0], [1], [0, 0, 1, 1], [], []>} : vector<8x24xf32>, vector<24x512xf32>, vector<8x512xf32> -> vector<8x512xf32>
    %c0_11 = arith.constant 0 : index
    %c0_12 = arith.constant 0 : index
    %12 = vector.load %arg5[%c0_11, %c0_12] : memref<1x512xf32, #tpu.memory_space<vmem>>, vector<1x512xf32>
    %13 = vector.broadcast %12 : vector<1x512xf32> to vector<8x512xf32>
    %14 = arith.addf %11, %13 : vector<8x512xf32>
    %15 = arith.mulf %8, %14 : vector<8x512xf32>
    %16 = vector.extract_strided_slice %15 {offsets = [0, 0], sizes = [8, 128], strides = [1, 1]} : vector<8x512xf32> to vector<8x128xf32>
    %17 = vector.extract_strided_slice %15 {offsets = [0, 128], sizes = [8, 128], strides = [1, 1]} : vector<8x512xf32> to vector<8x128xf32>
    %18 = vector.extract_strided_slice %15 {offsets = [0, 256], sizes = [8, 128], strides = [1, 1]} : vector<8x512xf32> to vector<8x128xf32>
    %19 = vector.extract_strided_slice %15 {offsets = [0, 384], sizes = [8, 128], strides = [1, 1]} : vector<8x512xf32> to vector<8x128xf32>
    %20 = arith.addf %16, %17 : vector<8x128xf32>
    %21 = arith.addf %18, %19 : vector<8x128xf32>
    %22 = arith.addf %20, %21 : vector<8x128xf32>
    %c0_13 = arith.constant 0 : index
    %c0_14 = arith.constant 0 : index
    %23 = vector.load %arg9[%c0_13, %c0_14] : memref<8x128xf32, #tpu.memory_space<vmem>>, vector<8x128xf32>
    %24 = arith.addf %23, %22 : vector<8x128xf32>
    %c0_15 = arith.constant 0 : index
    %c0_16 = arith.constant 0 : index
    %25 = vector.load %arg9[%c0_15, %c0_16] : memref<8x128xf32, #tpu.memory_space<vmem>>, vector<8x128xf32>
    tpu.vector_store %arg9[%c0_15, %c0_16], %24 {strides = array<i32>} : memref<8x128xf32, #tpu.memory_space<vmem>>, vector<8x128xf32>,
    %c0_i32_17 = arith.constant 0 : i32
    %26 = arith.cmpi eq, %arg1, %c0_i32_17 : i32
    %27 = arith.extui %26 : i1 to i32
    %c0_i32_18 = arith.constant 0 : i32
    %28 = arith.cmpi ne, %27, %c0_i32_18 : i32
    scf.if %28 {
      %c0_19 = arith.constant 0 : index
      %c0_20 = arith.constant 0 : index
      %29 = vector.load %arg9[%c0_19, %c0_20] : memref<8x128xf32, #tpu.memory_space<vmem>>, vector<8x128xf32>
      %cst_21 = arith.constant 2.500000e-01 : f32
      %30 = vector.broadcast %cst_21 : f32 to vector<8x128xf32>
      %31 = arith.mulf %29, %30 : vector<8x128xf32>
      %32 = arith.mulf %31, %31 : vector<8x128xf32>
      %cst_22 = arith.constant dense<0.000000e+00> : vector<8xf32>
      %33 = vector.multi_reduction <add>, %32, %cst_22 [1] : vector<8x128xf32> to vector<8xf32>
      %34 = vector.shape_cast %33 : vector<8xf32> to vector<8x1xf32>
      %cst_23 = arith.constant 1.000000e-24 : f32
      %35 = vector.broadcast %cst_23 : f32 to vector<8x1xf32>
      %36 = arith.maximumf %34, %35 : vector<8x1xf32>
      %37 = math.rsqrt %36 : vector<8x1xf32>
      %38 = vector.broadcast %37 : vector<8x1xf32> to vector<8x128xf32>
      %39 = arith.mulf %31, %38 : vector<8x128xf32>
      %c0_24 = arith.constant 0 : index
      %c0_25 = arith.constant 0 : index
      %40 = vector.load %arg8[%c0_24, %c0_25] : memref<8x128xf32, #tpu.memory_space<vmem>>, vector<8x128xf32>
      tpu.vector_store %arg8[%c0_24, %c0_25], %39 {strides = array<i32>} : memref<8x128xf32, #tpu.memory_space<vmem>>, vector<8x128xf32>,
    } else {
    }
    return
  }
  func.func @transform_0(%arg0: i32, %arg1: i32) -> (i32, i32) {
    %c0_i32 = arith.constant 0 : i32
    %c0_i32_0 = arith.constant 0 : i32
    return %arg0, %c0_i32 : i32, i32
  }
  func.func @transform_1(%arg0: i32, %arg1: i32) -> (i32, i32) {
    %c0_i32 = arith.constant 0 : i32
    %c0_i32_0 = arith.constant 0 : i32
    return %arg0, %c0_i32 : i32, i32
  }
  func.func @transform_2(%arg0: i32, %arg1: i32) -> (i32, i32) {
    %c0_i32 = arith.constant 0 : i32
    %c0_i32_0 = arith.constant 0 : i32
    return %c0_i32, %arg1 : i32, i32
  }
  func.func @transform_3(%arg0: i32, %arg1: i32) -> (i32, i32) {
    %c0_i32 = arith.constant 0 : i32
    %c0_i32_0 = arith.constant 0 : i32
    return %c0_i32, %arg1 : i32, i32
  }
  func.func @transform_4(%arg0: i32, %arg1: i32) -> (i32, i32) {
    %c0_i32 = arith.constant 0 : i32
    %c0_i32_0 = arith.constant 0 : i32
    return %c0_i32, %arg1 : i32, i32
  }
  func.func @transform_5(%arg0: i32, %arg1: i32) -> (i32, i32) {
    %c0_i32 = arith.constant 0 : i32
    %c0_i32_0 = arith.constant 0 : i32
    return %c0_i32, %arg1 : i32, i32
  }
  func.func @transform_6(%arg0: i32, %arg1: i32) -> (i32, i32) {
    %c0_i32 = arith.constant 0 : i32
    %c0_i32_0 = arith.constant 0 : i32
    return %arg0, %c0_i32 : i32, i32
  }
}

</mosaic_0001>

<llo_original>
// kernel: tpu_custom_call.1
$region0: #{tpu_custom_call.1}
  #allocation0 [shape = 'u32[]', space=smem, size = 0x4, offset = 0x4, fixed_abs, tag = 'smem constant byte address 0x4 - core index']
  #allocation1 [shape = 'u32[144,128]{1,0:T(1,128)}', space=vmem, size = 0x12000, scoped, tag = 'internal scratch']
  #allocation2 [shape = 'f32[8,128]{1,0:T(8,128)}', space=vmem, size = 0x1000, scoped, tag = 'scratch operand']
  %s0 = inlined_call_operand.hbm [shape: f32[8,24], index: 0, kind: input, shape index: {}]
  %s1 = inlined_call_operand.hbm [shape: f32[8,32], index: 1, kind: input, shape index: {}]
  %s2 = inlined_call_operand.hbm [shape: f32[24,512], index: 2, kind: input, shape index: {}]
  %s3 = inlined_call_operand.vmem [shape: f32[1,512], index: 3, kind: input, shape index: {}]
  %s4 = inlined_call_operand.hbm [shape: f32[32,512], index: 4, kind: input, shape index: {}]
  %s5 = inlined_call_operand.vmem [shape: f32[1,512], index: 5, kind: input, shape index: {}]
  %s6 = inlined_call_operand.hbm [shape: f32[8,128], index: 6, kind: output, shape index: {}]
  %s7 = sld [smem:[#allocation0]]
  $region58: #{tpu_custom_call.1} parent=0
    _
  %s9 = ssub.s32 1, %s7
  %s10 = scalar_select 0, %s9, %s7
  $region1: #{tpu_custom_call.1} parent=0
    #allocation3 [shape = 'u8[4096]{0}', space=vmem, size = 0x1000, scoped, tag = 'input window, operand 0, single buffered']
    #allocation4 [shape = 's32[1]{0}', space=sflag, size = 0x4, scoped, tag = 'scoped memory for tpu_custom_call.1']
    #allocation5 [shape = 's32[1]{0}', space=sflag, size = 0x4, scoped, tag = 'scoped memory for tpu_custom_call.1']
    #allocation6 [shape = 'u8[4096]{0}', space=vmem, size = 0x1000, scoped, tag = 'input window, operand 1, single buffered']
    #allocation7 [shape = 's32[1]{0}', space=sflag, size = 0x4, scoped, tag = 'scoped memory for tpu_custom_call.1']
    #allocation8 [shape = 'u8[49152]{0}', space=vmem, size = 0xc000, scoped, tag = 'input window, operand 2, single buffered']
    #allocation9 [shape = 'u8[65536]{0}', space=vmem, size = 0x10000, scoped, tag = 'input window, operand 4, single buffered']
    #allocation10 [shape = 's32[1]{0}', space=sflag, size = 0x4, scoped, tag = 'scoped memory for tpu_custom_call.1']
    #allocation11 [shape = 'u8[4096]{0}', space=vmem, size = 0x1000, scoped, tag = 'output window, operand 0, single buffered']
    %11 = vsyncpa [#allocation4], 0
    %12 = vsyncpa [#allocation7], 0
    %13 = vsyncpa [#allocation10], 0
    %14 = vsyncpa [#allocation5], 0
    // Predicated region
    $region2: #{tpu_custom_call.1} parent=1 // pred_check
      _
    $region3: #{tpu_custom_call.1} parent=1 // pred_check_branch
      %16 = sbr.rel (0) target = $region5
    $region4: #{tpu_custom_call.1} parent=1 // pred_region
      %s18 = ssub.s32 128, 128
      %19 = vsyncadd [#allocation4], %s18
      %s21 = sshll.u32 [#allocation3], 4
      %s22 = int_to_ptr.vmem [resolvable:$true] %s21
      %24 = dma.hbm_to_vmem [thread:$0]  %s0, 128, %s22, [#allocation4]
    $region5: #{tpu_custom_call.1} parent=1 // pred_fallthru
      _
    // Predicated region
    $region6: #{tpu_custom_call.1} parent=1 // pred_check
      _
    $region7: #{tpu_custom_call.1} parent=1 // pred_check_branch
      %26 = sbr.rel (0) target = $region9
    $region8: #{tpu_custom_call.1} parent=1 // pred_region
      %s28 = ssub.s32 128, 128
      %29 = vsyncadd [#allocation7], %s28
      %s31 = sshll.u32 [#allocation6], 4
      %s32 = int_to_ptr.vmem [resolvable:$true] %s31
      %34 = dma.hbm_to_vmem [thread:$0]  %s1, 128, %s32, [#allocation7]
    $region9: #{tpu_custom_call.1} parent=1 // pred_fallthru
      _
    // Predicated region
    $region10: #{tpu_custom_call.1} parent=1 // pred_check
      _
    $region11: #{tpu_custom_call.1} parent=1 // pred_check_branch
      %36 = sbr.rel (0) target = $region13
    $region12: #{tpu_custom_call.1} parent=1 // pred_region
      %s38 = ssub.s32 1536, 1536
      %39 = vsyncadd [#allocation7], %s38
      %s40 = sshll.u32 [#allocation8], 4
      %s41 = int_to_ptr.vmem [resolvable:$true] %s40
      %46 = dma.hbm_to_vmem [thread:$0]  %s2, 1536, %s41, [#allocation7], 512, 512, 32
    $region13: #{tpu_custom_call.1} parent=1 // pred_fallthru
      _
    // Predicated region
    $region14: #{tpu_custom_call.1} parent=1 // pred_check
      _
    $region15: #{tpu_custom_call.1} parent=1 // pred_check_branch
      %48 = sbr.rel (0) target = $region17
    $region16: #{tpu_custom_call.1} parent=1 // pred_region
      _
    $region17: #{tpu_custom_call.1} parent=1 // pred_fallthru
      _
    // Predicated region
    $region18: #{tpu_custom_call.1} parent=1 // pred_check
      _
    $region19: #{tpu_custom_call.1} parent=1 // pred_check_branch
      %50 = sbr.rel (0) target = $region21
    $region20: #{tpu_custom_call.1} parent=1 // pred_region
      %s52 = ssub.s32 2048, 2048
      %53 = vsyncadd [#allocation10], %s52
      %s54 = sshll.u32 [#allocation9], 4
      %s55 = int_to_ptr.vmem [resolvable:$true] %s54
      %60 = dma.hbm_to_vmem [thread:$0]  %s4, 2048, %s55, [#allocation10], 512, 512, 32
    $region21: #{tpu_custom_call.1} parent=1 // pred_fallthru
      _
    // Predicated region
    $region22: #{tpu_custom_call.1} parent=1 // pred_check
      _
    $region23: #{tpu_custom_call.1} parent=1 // pred_check_branch
      %62 = sbr.rel (0) target = $region25
    $region24: #{tpu_custom_call.1} parent=1 // pred_region
      _
    $region25: #{tpu_custom_call.1} parent=1 // pred_fallthru
      _
    // Predicated region
    $region26: #{tpu_custom_call.1} parent=1 // pred_check
      _
    $region27: #{tpu_custom_call.1} parent=1 // pred_check_branch
      %64 = sbr.rel (0) target = $region29
    $region28: #{tpu_custom_call.1} parent=1 // pred_region
      %65 = dma.done [#allocation4], 128
    $region29: #{tpu_custom_call.1} parent=1 // pred_fallthru
      _
    // Predicated region
    $region30: #{tpu_custom_call.1} parent=1 // pred_check
      _
    $region31: #{tpu_custom_call.1} parent=1 // pred_check_branch
      %67 = sbr.rel (0) target = $region33
    $region32: #{tpu_custom_call.1} parent=1 // pred_region
      %68 = dma.done [#allocation7], 128
    $region33: #{tpu_custom_call.1} parent=1 // pred_fallthru
      _
    // Predicated region
    $region34: #{tpu_custom_call.1} parent=1 // pred_check
      _
    $region35: #{tpu_custom_call.1} parent=1 // pred_check_branch
      %70 = sbr.rel (0) target = $region37
    $region36: #{tpu_custom_call.1} parent=1 // pred_region
      %71 = dma.done [#allocation7], 1536
    $region37: #{tpu_custom_call.1} parent=1 // pred_fallthru
      _
    // Predicated region
    $region38: #{tpu_custom_call.1} parent=1 // pred_check
      _
    $region39: #{tpu_custom_call.1} parent=1 // pred_check_branch
      %73 = sbr.rel (0) target = $region41
    $region40: #{tpu_custom_call.1} parent=1 // pred_region
      %74 = dma.done [#allocation10], 2048
    $region41: #{tpu_custom_call.1} parent=1 // pred_fallthru
      _
    %p75 = scmp.eq.s32.totalorder 0, 0
    // Predicated region
    $region42: #{tpu_custom_call.1} parent=1 // pred_check
      %p76 = pneg %p75
    $region43: #{tpu_custom_call.1} parent=1 // pred_check_branch
      %78 = sbr.rel (%p76) target = $region45
    $region44: #{tpu_custom_call.1} parent=1 // pred_region
      %79 = vst [vmem:[#allocation2] sm:$0xff] 0.0
    $region45: #{tpu_custom_call.1} parent=1 // pred_fallthru
      _
    %v80 = vld [vmem:[#allocation6] sm:$0xff]
    %v81 = vld [vmem:[#allocation9] sm:$0xff]
    %v82 = vld [vmem:[#allocation9 + $0x8] sm:$0xff]
    %v83 = vld [vmem:[#allocation9 + $0x10] sm:$0xff]
    %v84 = vld [vmem:[#allocation9 + $0x18] sm:$0xff]
    %v85 = vld [vmem:[#allocation9 + $0x20] sm:$0xff]
    %v86 = vld [vmem:[#allocation9 + $0x28] sm:$0xff]
    %v87 = vld [vmem:[#allocation9 + $0x30] sm:$0xff]
    %v88 = vld [vmem:[#allocation9 + $0x38] sm:$0xff]
    %v89 = vld [vmem:[#allocation9 + $0x40] sm:$0xff]
    %v90 = vld [vmem:[#allocation9 + $0x48] sm:$0xff]
    %v91 = vld [vmem:[#allocation9 + $0x50] sm:$0xff]
    %v92 = vld [vmem:[#allocation9 + $0x58] sm:$0xff]
    %v93 = vld [vmem:[#allocation9 + $0x60] sm:$0xff]
    %v94 = vld [vmem:[#allocation9 + $0x68] sm:$0xff]
    %v95 = vld [vmem:[#allocation9 + $0x70] sm:$0xff]
    %v96 = vld [vmem:[#allocation9 + $0x78] sm:$0xff]
    %v97 = vld [vmem:[%s5] sm:$0xf]
    %v99 = vlaneseq
    %v100 = vshrl.u32 %v99, 7
    %v101 = vsub.s32 0, %v100
    %v102 = vrot.slane %v97, %v101
    %v103 = vlaneseq
    %v104 = vshrl.u32 %v103, 7
    %v105 = vsub.s32 1, %v104
    %v106 = vrot.slane %v97, %v105
    %v107 = vlaneseq
    %v108 = vshrl.u32 %v107, 7
    %v109 = vsub.s32 2, %v108
    %v110 = vrot.slane %v97, %v109
    %v111 = vlaneseq
    %v112 = vshrl.u32 %v111, 7
    %v113 = vsub.s32 3, %v112
    %v114 = vrot.slane %v97, %v113
    %vm119 = vcmask 261120
    %v121 = vsel %vm119, %v80, 0
    %123 = vmatprep.subr.mxu0 %v82
    %124 = vmatpush1.msra.mxu0 %v81
    %125 = vmatprep.subr.mxu0 %v86
    %126 = vmatpush1.msra.mxu0 %v85
    %127 = vmatprep.subr.mxu0 %v90
    %128 = vmatpush1.msra.mxu0 %v89
    %129 = vmatprep.subr.mxu0 %v94
    %130 = vmatpush1.msra.mxu0 %v93
    %131 = vmatprep.subr.mxu0 0.0
    %132 = vmatpush1.msra.mxu0 0.0
    %133 = vmatprep.subr.mxu0 0.0
    %134 = vmatpush1.msra.mxu0 0.0
    %135 = vmatprep.subr.mxu0 0.0
    %136 = vmatpush1.msra.mxu0 0.0
    %137 = vmatprep.subr.mxu0 0.0
    %138 = vmatpush1.msra.mxu0 0.0
    %139 = vmatprep.subr.mxu0 0.0
    %140 = vmatpush1.msra.mxu0 0.0
    %141 = vmatprep.subr.mxu0 0.0
    %142 = vmatpush1.msra.mxu0 0.0
    %143 = vmatprep.subr.mxu0 0.0
    %144 = vmatpush1.msra.mxu0 0.0
    %145 = vmatprep.subr.mxu0 0.0
    %146 = vmatpush1.msra.mxu0 0.0
    %147 = vmatprep.subr.mxu0 0.0
    %148 = vmatpush1.msra.mxu0 0.0
    %149 = vmatprep.subr.mxu0 0.0
    %150 = vmatpush1.msra.mxu0 0.0
    %151 = vmatprep.subr.mxu0 0.0
    %152 = vmatpush1.msra.mxu0 0.0
    %153 = vmatprep.subr.mxu0 0.0
    %154 = vmatpush1.msra.mxu0 0.0
    %155 = vmatprep.subr.mxu0 0.0
    %156 = vmatpush1.msra.mxu0 0.0
    %157 = vmatprep.subr.mxu0 0.0
    %158 = vmatpush1.msra.mxu0 0.0
    %159 = vmatprep.subr.mxu0 0.0
    %160 = vmatpush1.msra.mxu0 0.0
    %161 = vmatprep.subr.mxu0 0.0
    %162 = vmatpush1.msra.mxu0 0.0
    %163 = vmatprep.subr.mxu0 0.0
    %164 = vmatpush1.msra.mxu0 0.0
    %165 = vmatprep.subr.mxu0 0.0
    %166 = vmatpush1.msra.mxu0 0.0
    %167 = vmatprep.subr.mxu0 0.0
    %168 = vmatpush1.msra.mxu0 0.0
    %169 = vmatprep.subr.mxu0 0.0
    %170 = vmatpush1.msra.mxu0 0.0
    %171 = vmatprep.subr.mxu0 0.0
    %172 = vmatpush1.msra.mxu0 0.0
    %173 = vmatprep.subr.mxu0 0.0
    %174 = vmatpush1.msra.mxu0 0.0
    %175 = vmatprep.subr.mxu0 0.0
    %176 = vmatpush1.msra.mxu0 0.0
    %177 = vmatprep.subr.mxu0 0.0
    %178 = vmatpush1.msra.mxu0 0.0
    %179 = vmatprep.subr.mxu0 0.0
    %180 = vmatpush1.msra.mxu0 0.0
    %181 = vmatprep.subr.mxu0 0.0
    %182 = vmatpush1.msra.mxu0 0.0
    %183 = vmatprep.subr.mxu0 0.0
    %184 = vmatpush1.msra.mxu0 0.0
    %185 = vmatprep.subr.mxu0 0.0
    %186 = vmatpush1.msra.mxu0 0.0
    %187 = vmatprep.mubr.f32.mxu0 0.0
    %188 = vmatmul.mubr.f32.gmra.mrb[0].mxu0 %v121
    %v189 = vpop.f32.mrb[0].mxu0
    %v190 = vadd.f32 %v102, %v189
    %v191 = vpop.f32.mrb[0].mxu0
    %v192 = vadd.f32 %v106, %v191
    %193 = vdwg.mxu0
    %194 = vmatprep.subr.mxu0 %v84
    %195 = vmatpush1.msra.mxu0 %v83
    %196 = vmatprep.subr.mxu0 %v88
    %197 = vmatpush1.msra.mxu0 %v87
    %198 = vmatprep.subr.mxu0 %v92
    %199 = vmatpush1.msra.mxu0 %v91
    %200 = vmatprep.subr.mxu0 %v96
    %201 = vmatpush1.msra.mxu0 %v95
    %202 = vmatprep.subr.mxu0 0.0
    %203 = vmatpush1.msra.mxu0 0.0
    %204 = vmatprep.subr.mxu0 0.0
    %205 = vmatpush1.msra.mxu0 0.0
    %206 = vmatprep.subr.mxu0 0.0
    %207 = vmatpush1.msra.mxu0 0.0
    %208 = vmatprep.subr.mxu0 0.0
    %209 = vmatpush1.msra.mxu0 0.0
    %210 = vmatprep.subr.mxu0 0.0
    %211 = vmatpush1.msra.mxu0 0.0
    %212 = vmatprep.subr.mxu0 0.0
    %213 = vmatpush1.msra.mxu0 0.0
    %214 = vmatprep.subr.mxu0 0.0
    %215 = vmatpush1.msra.mxu0 0.0
    %216 = vmatprep.subr.mxu0 0.0
    %217 = vmatpush1.msra.mxu0 0.0
    %218 = vmatprep.subr.mxu0 0.0
    %219 = vmatpush1.msra.mxu0 0.0
    %220 = vmatprep.subr.mxu0 0.0
    %221 = vmatpush1.msra.mxu0 0.0
    %222 = vmatprep.subr.mxu0 0.0
    %223 = vmatpush1.msra.mxu0 0.0
    %224 = vmatprep.subr.mxu0 0.0
    %225 = vmatpush1.msra.mxu0 0.0
    %226 = vmatprep.subr.mxu0 0.0
    %227 = vmatpush1.msra.mxu0 0.0
    %228 = vmatprep.subr.mxu0 0.0
    %229 = vmatpush1.msra.mxu0 0.0
    %230 = vmatprep.subr.mxu0 0.0
    %231 = vmatpush1.msra.mxu0 0.0
    %232 = vmatprep.subr.mxu0 0.0
    %233 = vmatpush1.msra.mxu0 0.0
    %234 = vmatprep.subr.mxu0 0.0
    %235 = vmatpush1.msra.mxu0 0.0
    %236 = vmatprep.subr.mxu0 0.0
    %237 = vmatpush1.msra.mxu0 0.0
    %238 = vmatprep.subr.mxu0 0.0
    %239 = vmatpush1.msra.mxu0 0.0
    %240 = vmatprep.subr.mxu0 0.0
    %241 = vmatpush1.msra.mxu0 0.0
    %242 = vmatprep.subr.mxu0 0.0
    %243 = vmatpush1.msra.mxu0 0.0
    %244 = vmatprep.subr.mxu0 0.0
    %245 = vmatpush1.msra.mxu0 0.0
    %246 = vmatprep.subr.mxu0 0.0
    %247 = vmatpush1.msra.mxu0 0.0
    %248 = vmatprep.subr.mxu0 0.0
    %249 = vmatpush1.msra.mxu0 0.0
    %250 = vmatprep.subr.mxu0 0.0
    %251 = vmatpush1.msra.mxu0 0.0
    %252 = vmatprep.subr.mxu0 0.0
    %253 = vmatpush1.msra.mxu0 0.0
    %254 = vmatprep.subr.mxu0 0.0
    %255 = vmatpush1.msra.mxu0 0.0
    %256 = vmatprep.subr.mxu0 0.0
    %257 = vmatpush1.msra.mxu0 0.0
    %258 = vmatprep.mubr.f32.mxu0 0.0
    %259 = vmatmul.mubr.f32.gmra.mrb[0].mxu0 %v121
    %v260 = vpop.f32.mrb[0].mxu0
    %v261 = vadd.f32 %v110, %v260
    %v262 = vpop.f32.mrb[0].mxu0
    %v263 = vadd.f32 %v114, %v262
    %264 = vdwg.mxu0
    %v265 = vld [vmem:[#allocation3] sm:$0xff]
    %v266 = vld [vmem:[#allocation8] sm:$0xff]
    %v267 = vld [vmem:[#allocation8 + $0x8] sm:$0xff]
    %v268 = vld [vmem:[#allocation8 + $0x10] sm:$0xff]
    %v269 = vld [vmem:[#allocation8 + $0x18] sm:$0xff]
    %v270 = vld [vmem:[#allocation8 + $0x20] sm:$0xff]
    %v271 = vld [vmem:[#allocation8 + $0x28] sm:$0xff]
    %v272 = vld [vmem:[#allocation8 + $0x30] sm:$0xff]
    %v273 = vld [vmem:[#allocation8 + $0x38] sm:$0xff]
    %v274 = vld [vmem:[#allocation8 + $0x40] sm:$0xff]
    %v275 = vld [vmem:[#allocation8 + $0x48] sm:$0xff]
    %v276 = vld [vmem:[#allocation8 + $0x50] sm:$0xff]
    %v277 = vld [vmem:[#allocation8 + $0x58] sm:$0xff]
    %v278 = vld [vmem:[%s3] sm:$0xf]
    %v280 = vlaneseq
    %v281 = vshrl.u32 %v280, 7
    %v282 = vsub.s32 0, %v281
    %v283 = vrot.slane %v278, %v282
    %v284 = vlaneseq
    %v285 = vshrl.u32 %v284, 7
    %v286 = vsub.s32 1, %v285
    %v287 = vrot.slane %v278, %v286
    %v288 = vlaneseq
    %v289 = vshrl.u32 %v288, 7
    %v290 = vsub.s32 2, %v289
    %v291 = vrot.slane %v278, %v290
    %v292 = vlaneseq
    %v293 = vshrl.u32 %v292, 7
    %v294 = vsub.s32 3, %v293
    %v295 = vrot.slane %v278, %v294
    %vm300 = vcmask 195584
    %v302 = vsel %vm300, %v265, 0
    %304 = vmatprep.subr.mxu0 %v267
    %305 = vmatpush1.msra.mxu0 %v266
    %306 = vmatprep.subr.mxu0 %v271
    %307 = vmatpush1.msra.mxu0 %v270
    %308 = vmatprep.subr.mxu0 %v275
    %309 = vmatpush1.msra.mxu0 %v274
    %310 = vmatprep.subr.mxu0 0.0
    %311 = vmatpush1.msra.mxu0 0.0
    %312 = vmatprep.subr.mxu0 0.0
    %313 = vmatpush1.msra.mxu0 0.0
    %314 = vmatprep.subr.mxu0 0.0
    %315 = vmatpush1.msra.mxu0 0.0
    %316 = vmatprep.subr.mxu0 0.0
    %317 = vmatpush1.msra.mxu0 0.0
    %318 = vmatprep.subr.mxu0 0.0
    %319 = vmatpush1.msra.mxu0 0.0
    %320 = vmatprep.subr.mxu0 0.0
    %321 = vmatpush1.msra.mxu0 0.0
    %322 = vmatprep.subr.mxu0 0.0
    %323 = vmatpush1.msra.mxu0 0.0
    %324 = vmatprep.subr.mxu0 0.0
    %325 = vmatpush1.msra.mxu0 0.0
    %326 = vmatprep.subr.mxu0 0.0
    %327 = vmatpush1.msra.mxu0 0.0
    %328 = vmatprep.subr.mxu0 0.0
    %329 = vmatpush1.msra.mxu0 0.0
    %330 = vmatprep.subr.mxu0 0.0
    %331 = vmatpush1.msra.mxu0 0.0
    %332 = vmatprep.subr.mxu0 0.0
    %333 = vmatpush1.msra.mxu0 0.0
    %334 = vmatprep.subr.mxu0 0.0
    %335 = vmatpush1.msra.mxu0 0.0
    %336 = vmatprep.subr.mxu0 0.0
    %337 = vmatpush1.msra.mxu0 0.0
    %338 = vmatprep.subr.mxu0 0.0
    %339 = vmatpush1.msra.mxu0 0.0
    %340 = vmatprep.subr.mxu0 0.0
    %341 = vmatpush1.msra.mxu0 0.0
    %342 = vmatprep.subr.mxu0 0.0
    %343 = vmatpush1.msra.mxu0 0.0
    %344 = vmatprep.subr.mxu0 0.0
    %345 = vmatpush1.msra.mxu0 0.0
    %346 = vmatprep.subr.mxu0 0.0
    %347 = vmatpush1.msra.mxu0 0.0
    %348 = vmatprep.subr.mxu0 0.0
    %349 = vmatpush1.msra.mxu0 0.0
    %350 = vmatprep.subr.mxu0 0.0
    %351 = vmatpush1.msra.mxu0 0.0
    %352 = vmatprep.subr.mxu0 0.0
    %353 = vmatpush1.msra.mxu0 0.0
    %354 = vmatprep.subr.mxu0 0.0
    %355 = vmatpush1.msra.mxu0 0.0
    %356 = vmatprep.subr.mxu0 0.0
    %357 = vmatpush1.msra.mxu0 0.0
    %358 = vmatprep.subr.mxu0 0.0
    %359 = vmatpush1.msra.mxu0 0.0
    %360 = vmatprep.subr.mxu0 0.0
    %361 = vmatpush1.msra.mxu0 0.0
    %362 = vmatprep.subr.mxu0 0.0
    %363 = vmatpush1.msra.mxu0 0.0
    %364 = vmatprep.subr.mxu0 0.0
    %365 = vmatpush1.msra.mxu0 0.0
    %366 = vmatprep.subr.mxu0 0.0
    %367 = vmatpush1.msra.mxu0 0.0
    %368 = vmatprep.mubr.f32.mxu0 0.0
    %369 = vmatmul.mubr.f32.gmra.mrb[0].mxu0 %v302
    %v370 = vpop.f32.mrb[0].mxu0
    %v371 = vadd.f32 %v283, %v370
    %v372 = vpop.f32.mrb[0].mxu0
    %v373 = vadd.f32 %v287, %v372
    %374 = vdwg.mxu0
    %375 = vmatprep.subr.mxu0 %v269
    %376 = vmatpush1.msra.mxu0 %v268
    %377 = vmatprep.subr.mxu0 %v273
    %378 = vmatpush1.msra.mxu0 %v272
    %379 = vmatprep.subr.mxu0 %v277
    %380 = vmatpush1.msra.mxu0 %v276
    %381 = vmatprep.subr.mxu0 0.0
    %382 = vmatpush1.msra.mxu0 0.0
    %383 = vmatprep.subr.mxu0 0.0
    %384 = vmatpush1.msra.mxu0 0.0
    %385 = vmatprep.subr.mxu0 0.0
    %386 = vmatpush1.msra.mxu0 0.0
    %387 = vmatprep.subr.mxu0 0.0
    %388 = vmatpush1.msra.mxu0 0.0
    %389 = vmatprep.subr.mxu0 0.0
    %390 = vmatpush1.msra.mxu0 0.0
    %391 = vmatprep.subr.mxu0 0.0
    %392 = vmatpush1.msra.mxu0 0.0
    %393 = vmatprep.subr.mxu0 0.0
    %394 = vmatpush1.msra.mxu0 0.0
    %395 = vmatprep.subr.mxu0 0.0
    %396 = vmatpush1.msra.mxu0 0.0
    %397 = vmatprep.subr.mxu0 0.0
    %398 = vmatpush1.msra.mxu0 0.0
    %399 = vmatprep.subr.mxu0 0.0
    %400 = vmatpush1.msra.mxu0 0.0
    %401 = vmatprep.subr.mxu0 0.0
    %402 = vmatpush1.msra.mxu0 0.0
    %403 = vmatprep.subr.mxu0 0.0
    %404 = vmatpush1.msra.mxu0 0.0
    %405 = vmatprep.subr.mxu0 0.0
    %406 = vmatpush1.msra.mxu0 0.0
    %407 = vmatprep.subr.mxu0 0.0
    %408 = vmatpush1.msra.mxu0 0.0
    %409 = vmatprep.subr.mxu0 0.0
    %410 = vmatpush1.msra.mxu0 0.0
    %411 = vmatprep.subr.mxu0 0.0
    %412 = vmatpush1.msra.mxu0 0.0
    %413 = vmatprep.subr.mxu0 0.0
    %414 = vmatpush1.msra.mxu0 0.0
    %415 = vmatprep.subr.mxu0 0.0
    %416 = vmatpush1.msra.mxu0 0.0
    %417 = vmatprep.subr.mxu0 0.0
    %418 = vmatpush1.msra.mxu0 0.0
    %419 = vmatprep.subr.mxu0 0.0
    %420 = vmatpush1.msra.mxu0 0.0
    %421 = vmatprep.subr.mxu0 0.0
    %422 = vmatpush1.msra.mxu0 0.0
    %423 = vmatprep.subr.mxu0 0.0
    %424 = vmatpush1.msra.mxu0 0.0
    %425 = vmatprep.subr.mxu0 0.0
    %426 = vmatpush1.msra.mxu0 0.0
    %427 = vmatprep.subr.mxu0 0.0
    %428 = vmatpush1.msra.mxu0 0.0
    %429 = vmatprep.subr.mxu0 0.0
    %430 = vmatpush1.msra.mxu0 0.0
    %431 = vmatprep.subr.mxu0 0.0
    %432 = vmatpush1.msra.mxu0 0.0
    %433 = vmatprep.subr.mxu0 0.0
    %434 = vmatpush1.msra.mxu0 0.0
    %435 = vmatprep.subr.mxu0 0.0
    %436 = vmatpush1.msra.mxu0 0.0
    %437 = vmatprep.subr.mxu0 0.0
    %438 = vmatpush1.msra.mxu0 0.0
    %439 = vmatprep.mubr.f32.mxu0 0.0
    %440 = vmatmul.mubr.f32.gmra.mrb[0].mxu0 %v302
    %v441 = vpop.f32.mrb[0].mxu0
    %v442 = vadd.f32 %v291, %v441
    %v443 = vpop.f32.mrb[0].mxu0
    %v444 = vadd.f32 %v295, %v443
    %445 = vdwg.mxu0
    %v446 = vmul.f32 %v190, %v371
    %v447 = vmul.f32 %v192, %v373
    %v448 = vmul.f32 %v261, %v442
    %v449 = vmul.f32 %v263, %v444
    %v450 = vadd.f32 %v446, %v447
    %v451 = vadd.f32 %v448, %v449
    %v452 = vadd.f32 %v450, %v451
    %v453 = vld [vmem:[#allocation2] sm:$0xff]
    %v454 = vadd.f32 %v453, %v452
    %455 = vst [vmem:[#allocation2] sm:$0xff] %v454
    // Predicated region
    $region46: #{tpu_custom_call.1} parent=1 // pred_check
      %p456 = pneg %p75
    $region47: #{tpu_custom_call.1} parent=1 // pred_check_branch
      %458 = sbr.rel (%p456) target = $region49
    $region48: #{tpu_custom_call.1} parent=1 // pred_region
      %v459 = vld [vmem:[#allocation2] sm:$0xff]
      %v460 = vmul.f32 %v459, 0.25
      %v461 = vmul.f32 %v460, %v460
      %462 = vadd.xlane.f32.xlu0 %v461
      %v463 = vpop.xlane.xlu0 %462
      %v464 = vmax.f32 %v463, 1e-24
      %v465 = vrsqrt.pop %v464
      %v466 = vmul.f32 %v460, %v465
      %467 = vst [vmem:[#allocation11] sm:$0xff] %v466
    $region49: #{tpu_custom_call.1} parent=1 // pred_fallthru
      _
    // Predicated region
    $region50: #{tpu_custom_call.1} parent=1 // pred_check
      _
    $region51: #{tpu_custom_call.1} parent=1 // pred_check_branch
      %469 = sbr.rel (0) target = $region53
    $region52: #{tpu_custom_call.1} parent=1 // pred_region
      %s471 = ssub.s32 128, 128
      %472 = vsyncadd [#allocation5], %s471
      %s474 = sshll.u32 [#allocation11], 4
      %s475 = int_to_ptr.vmem [resolvable:$true] %s474
      %477 = dma.vmem_to_hbm [thread:$0]  %s475, 128, %s6, [#allocation5]
    $region53: #{tpu_custom_call.1} parent=1 // pred_fallthru
      _
    // Predicated region
    $region54: #{tpu_custom_call.1} parent=1 // pred_check
      _
    $region55: #{tpu_custom_call.1} parent=1 // pred_check_branch
      %479 = sbr.rel (0) target = $region57
    $region56: #{tpu_custom_call.1} parent=1 // pred_region
      %480 = dma.done [#allocation5], 128
    $region57: #{tpu_custom_call.1} parent=1 // pred_fallthru
      _
    %481 = vsyncpa [#allocation4], 1
    %482 = vsyncpa [#allocation7], 1
    %483 = vsyncpa [#allocation10], 1
    %484 = vsyncpa [#allocation5], 1

</llo_original>
